<compile_context>
chip_gen: v5e
topology: v5e:2x2
jax: 0.10.0
libtpu: 0.0.40
codegen_flags: <defaults>
</compile_context>

<pallas_src>
import jax
import jax.numpy as jnp
from jax import lax
from jax.experimental import pallas as pl
from jax.experimental.pallas import tpu as pltpu


def _basic_block_kernel(x_ref, b1_ref, b2_ref, t_ref, o_ref):
    """One grid step = one batch element.

    x_ref : (H+2, WC) f32   rows = padded H (1 zero row each side), lanes = (w, cin)
    b1_ref: (3, WC, WC) bf16 banded conv1 weights (bn1 scale folded in), one slab per kh
    b2_ref: (3, WC, WC) bf16 banded conv2 weights (bn2 scale folded in)
    t_ref : (2, WC) f32     row 0 = bn1 shift, row 1 = bn2 shift (tiled over w)
    o_ref : (H, WC)
    """
    hp2, wc = x_ref.shape
    H = hp2 - 2

    x = x_ref[...]                                           # (H+2, WC) f32

    # ---- conv1 (+ folded bn1 scale): 3 accumulating per-tap MXU dots ----
    y1 = jnp.zeros((H, wc), jnp.float32)
    for kh in range(3):
        y1 = y1 + jnp.dot(x[kh:kh + H].astype(jnp.bfloat16), b1_ref[kh],
                          preferred_element_type=jnp.float32)
    y1 = jnp.maximum(y1 + t_ref[0:1, :], 0.0)                # bn1 shift + relu (f32)

    # structural zero rows = conv2's vertical zero padding (no row mask needed)
    zero_row = jnp.zeros((1, wc), jnp.bfloat16)
    y1p = jnp.concatenate([zero_row, y1.astype(jnp.bfloat16), zero_row], axis=0)

    # ---- conv2 (+ folded bn2 scale): 3 accumulating per-tap MXU dots ----
    y2 = jnp.zeros((H, wc), jnp.float32)
    for kh in range(3):
        y2 = y2 + jnp.dot(y1p[kh:kh + H], b2_ref[kh],
                          preferred_element_type=jnp.float32)

    # bn2 shift + residual (un-padded slice of the same input) + relu
    y2 = y2 + t_ref[1:2, :] + x[1:H + 1]
    o_ref[...] = jnp.maximum(y2, 0.0).astype(o_ref.dtype)


def _band_weight(w_hwio, width):
    """(3, 3, Cin, Cout) HWIO conv weights -> (3, W*Cin, W*Cout) banded slabs.

    Slab kh maps input lane (w_in, ci) to output lane (w, co) with w_in = w + kw - 1;
    out-of-range horizontal taps (zero padding along W) are structurally zero.
    """
    cin, cout = w_hwio.shape[2], w_hwio.shape[3]
    slabs = []
    for kh in range(3):
        blk = jnp.zeros((width * cin, width * cout), w_hwio.dtype)
        for kw in range(3):
            shift = jnp.eye(width, k=1 - kw, dtype=w_hwio.dtype)
            blk = blk + jnp.kron(shift, w_hwio[kh, kw])
        slabs.append(blk)
    return jnp.stack(slabs, axis=0)


def basic_block_forward(x_nhwc, w1, s1, b1, w2, s2, b2):
    """x_nhwc: (N, H, W, Cin) f32; w*: (3,3,Cin,Cout) HWIO; s*/b*: (C,) folded BN.

    Returns (N, H, W, Cout). Implements the stride=1, upsample=None BasicBlock path.
    """
    N, H, W, Cin = x_nhwc.shape
    Cmid, Cout = w1.shape[3], w2.shape[3]
    assert Cin == Cmid == Cout, "stride-1 residual path requires inplanes == planes"
    WC = W * Cout

    # rows = padded H per batch, lanes = (w, c); 1 zero row each side for conv1.
    x_in = jnp.pad(x_nhwc.reshape(N, H, WC), ((0, 0), (1, 1), (0, 0)))   # (N, H+2, WC)

    # banded weights, BN scales folded into the output columns, cast to bf16 for MXU.
    band1 = (_band_weight(w1, W) * jnp.tile(s1, W)[None, None, :]).astype(jnp.bfloat16)
    band2 = (_band_weight(w2, W) * jnp.tile(s2, W)[None, None, :]).astype(jnp.bfloat16)
    t_pack = jnp.stack([jnp.tile(b1, W), jnp.tile(b2, W)]).astype(jnp.float32)  # (2, WC)

    grid_spec = pltpu.PrefetchScalarGridSpec(
        num_scalar_prefetch=0,
        grid=(N,),
        in_specs=[
            pl.BlockSpec((None, H + 2, WC), lambda n: (n, 0, 0)),   # x (per batch)
            pl.BlockSpec((3, WC, WC), lambda n: (0, 0, 0)),         # band1 (resident)
            pl.BlockSpec((3, WC, WC), lambda n: (0, 0, 0)),         # band2 (resident)
            pl.BlockSpec((2, WC), lambda n: (0, 0)),                # bn shifts
        ],
        out_specs=pl.BlockSpec((None, H, WC), lambda n: (n, 0, 0)),
    )

    out_rows = pl.pallas_call(
        _basic_block_kernel,
        out_shape=jax.ShapeDtypeStruct((N, H, WC), x_nhwc.dtype),
        grid_spec=grid_spec,
        compiler_params=pltpu.CompilerParams(
            dimension_semantics=("parallel",)),
    )(x_in, band1, band2, t_pack)

    return out_rows.reshape(N, H, W, Cout)


def _reference_nhwc(x, w1, s1, b1, w2, s2, b2):
    """Pure-JAX f32 reference (NHWC) for correctness check."""
    dn = ('NHWC', 'HWIO', 'NHWC')
    y = lax.conv_general_dilated(x, w1, (1, 1), ((1, 1), (1, 1)),
                                 dimension_numbers=dn)
    y = jnp.maximum(y * s1.reshape(1, 1, 1, -1) + b1.reshape(1, 1, 1, -1), 0.0)
    y = lax.conv_general_dilated(y, w2, (1, 1), ((1, 1), (1, 1)),
                                 dimension_numbers=dn)
    y = y * s2.reshape(1, 1, 1, -1) + b2.reshape(1, 1, 1, -1) + x
    return jnp.maximum(y, 0.0)


def _fold_bn(gamma, beta, mean, var, eps=1e-5):
    scale = gamma / jnp.sqrt(var + eps)
    shift = beta - mean * scale
    return scale, shift


if __name__ == "__main__":
    key = jax.random.PRNGKey(0)
    (k_x, k_w1, k_w2, k_g1, k_b1, k_m1, k_v1,
     k_g2, k_b2, k_m2, k_v2) = jax.random.split(key, 11)

    N, C, H, W = 2, 4, 16, 16          # inplanes = planes = 4, stride = 1
    inplanes = planes = C

    # Input in PyTorch NCHW convention, transposed to NHWC for the kernel.
    x_nchw = jax.random.normal(k_x, (N, C, H, W), dtype=jnp.float32)
    x_nhwc = jnp.transpose(x_nchw, (0, 2, 3, 1))

    # conv3x3 weights, HWIO layout (Torch OIHW -> HWIO transpose when loading).
    w1 = 0.1 * jax.random.normal(k_w1, (3, 3, inplanes, planes), jnp.float32)
    w2 = 0.1 * jax.random.normal(k_w2, (3, 3, planes, planes), jnp.float32)

    # Deterministic eval-mode BatchNorm parameters.
    gamma1 = 1.0 + 0.1 * jax.random.normal(k_g1, (planes,), jnp.float32)
    beta1 = 0.05 * jax.random.normal(k_b1, (planes,), jnp.float32)
    mean1 = 0.1 * jax.random.normal(k_m1, (planes,), jnp.float32)
    var1 = 1.0 + 0.1 * jnp.abs(jax.random.normal(k_v1, (planes,), jnp.float32))
    gamma2 = 1.0 + 0.1 * jax.random.normal(k_g2, (planes,), jnp.float32)
    beta2 = 0.05 * jax.random.normal(k_b2, (planes,), jnp.float32)
    mean2 = 0.1 * jax.random.normal(k_m2, (planes,), jnp.float32)
    var2 = 1.0 + 0.1 * jnp.abs(jax.random.normal(k_v2, (planes,), jnp.float32))

    s1, b1 = _fold_bn(gamma1, beta1, mean1, var1)
    s2, b2 = _fold_bn(gamma2, beta2, mean2, var2)

    out = basic_block_forward(x_nhwc, w1, s1, b1, w2, s2, b2)
    out = jax.block_until_ready(out)

    ref = _reference_nhwc(x_nhwc, w1, s1, b1, w2, s2, b2)
    ref = jax.block_until_ready(ref)

    assert out.shape == (N, H, W, C)
    max_err = jnp.max(jnp.abs(out - ref))
    # bf16 MXU operands with f32 accumulation -> loosened tolerance vs exact-f32.
    assert jnp.allclose(out, ref, atol=3e-2, rtol=3e-2), f"max abs err {max_err}"

    print("KERNEL_OK")
</pallas_src>

<mosaic_0001>
module attributes {stable_mosaic.version = 11 : i64} {
  func.func @_basic_block_kernel(%arg0: i32, %arg1: memref<1x18x64xf32, #tpu.memory_space<vmem>>, %arg2: memref<3x64x64xbf16, #tpu.memory_space<vmem>>, %arg3: memref<3x64x64xbf16, #tpu.memory_space<vmem>>, %arg4: memref<2x64xf32, #tpu.memory_space<vmem>>, %arg5: memref<1x16x64xf32, #tpu.memory_space<vmem>>) attributes {dimension_semantics = [#tpu.dimension_semantics<parallel>], iteration_bounds = array<i64: 2>, scalar_prefetch = 0 : i64, scratch_operands = 0 : i64, tpu.core_type = #tpu.core_type<tc>, window_params = [{transform_indices = @transform_0, window_bounds = array<i64: 1, 18, 64>}, {pipeline_mode = #tpu.pipeline_mode<synchronous>, transform_indices = @transform_1, window_bounds = array<i64: 3, 64, 64>}, {pipeline_mode = #tpu.pipeline_mode<synchronous>, transform_indices = @transform_2, window_bounds = array<i64: 3, 64, 64>}, {pipeline_mode = #tpu.pipeline_mode<synchronous>, transform_indices = @transform_3, window_bounds = array<i64: 2, 64>}, {transform_indices = @transform_4, window_bounds = array<i64: 1, 16, 64>}]} {
    %c0 = arith.constant 0 : index
    %c0_0 = arith.constant 0 : index
    %c0_1 = arith.constant 0 : index
    %0 = vector.load %arg1[%c0, %c0_0, %c0_1] : memref<1x18x64xf32, #tpu.memory_space<vmem>>, vector<1x18x64xf32>
    %1 = vector.shape_cast %0 : vector<1x18x64xf32> to vector<18x64xf32>
    %cst = arith.constant 0.000000e+00 : f32
    %2 = vector.broadcast %cst : f32 to vector<16x64xf32>
    %3 = vector.extract_strided_slice %1 {offsets = [0, 0], sizes = [16, 64], strides = [1, 1]} : vector<18x64xf32> to vector<16x64xf32>
    %4 = arith.truncf %3 : vector<16x64xf32> to vector<16x64xbf16>
    %c0_2 = arith.constant 0 : index
    %c0_3 = arith.constant 0 : index
    %c0_4 = arith.constant 0 : index
    %5 = vector.load %arg2[%c0_2, %c0_3, %c0_4] : memref<3x64x64xbf16, #tpu.memory_space<vmem>>, vector<1x64x64xbf16>
    %6 = vector.shape_cast %5 : vector<1x64x64xbf16> to vector<64x64xbf16>
    %cst_5 = arith.constant dense<0.000000e+00> : vector<16x64xf32>
    %7 = tpu.matmul %4, %6, %cst_5 {dimension_numbers = #tpu.dot_dimension_numbers<[1], [0], [0], [1], [0, 0, 1, 1], [], []>} : vector<16x64xbf16>, vector<64x64xbf16>, vector<16x64xf32> -> vector<16x64xf32>
    %8 = arith.addf %2, %7 : vector<16x64xf32>
    %9 = vector.extract_strided_slice %1 {offsets = [1, 0], sizes = [16, 64], strides = [1, 1]} : vector<18x64xf32> to vector<16x64xf32>
    %10 = arith.truncf %9 : vector<16x64xf32> to vector<16x64xbf16>
    %c1 = arith.constant 1 : index
    %c0_6 = arith.constant 0 : index
    %c0_7 = arith.constant 0 : index
    %11 = vector.load %arg2[%c1, %c0_6, %c0_7] : memref<3x64x64xbf16, #tpu.memory_space<vmem>>, vector<1x64x64xbf16>
    %12 = vector.shape_cast %11 : vector<1x64x64xbf16> to vector<64x64xbf16>
    %cst_8 = arith.constant dense<0.000000e+00> : vector<16x64xf32>
    %13 = tpu.matmul %10, %12, %cst_8 {dimension_numbers = #tpu.dot_dimension_numbers<[1], [0], [0], [1], [0, 0, 1, 1], [], []>} : vector<16x64xbf16>, vector<64x64xbf16>, vector<16x64xf32> -> vector<16x64xf32>
    %14 = arith.addf %8, %13 : vector<16x64xf32>
    %15 = vector.extract_strided_slice %1 {offsets = [2, 0], sizes = [16, 64], strides = [1, 1]} : vector<18x64xf32> to vector<16x64xf32>
    %16 = arith.truncf %15 : vector<16x64xf32> to vector<16x64xbf16>
    %c2 = arith.constant 2 : index
    %c0_9 = arith.constant 0 : index
    %c0_10 = arith.constant 0 : index
    %17 = vector.load %arg2[%c2, %c0_9, %c0_10] : memref<3x64x64xbf16, #tpu.memory_space<vmem>>, vector<1x64x64xbf16>
    %18 = vector.shape_cast %17 : vector<1x64x64xbf16> to vector<64x64xbf16>
    %cst_11 = arith.constant dense<0.000000e+00> : vector<16x64xf32>
    %19 = tpu.matmul %16, %18, %cst_11 {dimension_numbers = #tpu.dot_dimension_numbers<[1], [0], [0], [1], [0, 0, 1, 1], [], []>} : vector<16x64xbf16>, vector<64x64xbf16>, vector<16x64xf32> -> vector<16x64xf32>
    %20 = arith.addf %14, %19 : vector<16x64xf32>
    %c0_12 = arith.constant 0 : index
    %c0_13 = arith.constant 0 : index
    %21 = vector.load %arg4[%c0_12, %c0_13] : memref<2x64xf32, #tpu.memory_space<vmem>>, vector<1x64xf32>
    %22 = vector.broadcast %21 : vector<1x64xf32> to vector<16x64xf32>
    %23 = arith.addf %20, %22 : vector<16x64xf32>
    %cst_14 = arith.constant 0.000000e+00 : f32
    %24 = vector.broadcast %cst_14 : f32 to vector<16x64xf32>
    %25 = arith.maximumf %23, %24 : vector<16x64xf32>
    %cst_15 = arith.constant 0.000000e+00 : bf16
    %26 = vector.broadcast %cst_15 : bf16 to vector<1x64xbf16>
    %27 = arith.truncf %25 : vector<16x64xf32> to vector<16x64xbf16>
    %28 = tpu.concatenate %26, %27, %26 in 0 : vector<1x64xbf16>, vector<16x64xbf16>, vector<1x64xbf16> -> vector<18x64xbf16>
    %cst_16 = arith.constant 0.000000e+00 : f32
    %29 = vector.broadcast %cst_16 : f32 to vector<16x64xf32>
    %30 = vector.extract_strided_slice %28 {offsets = [0, 0], sizes = [16, 64], strides = [1, 1]} : vector<18x64xbf16> to vector<16x64xbf16>
    %c0_17 = arith.constant 0 : index
    %c0_18 = arith.constant 0 : index
    %c0_19 = arith.constant 0 : index
    %31 = vector.load %arg3[%c0_17, %c0_18, %c0_19] : memref<3x64x64xbf16, #tpu.memory_space<vmem>>, vector<1x64x64xbf16>
    %32 = vector.shape_cast %31 : vector<1x64x64xbf16> to vector<64x64xbf16>
    %cst_20 = arith.constant dense<0.000000e+00> : vector<16x64xf32>
    %33 = tpu.matmul %30, %32, %cst_20 {dimension_numbers = #tpu.dot_dimension_numbers<[1], [0], [0], [1], [0, 0, 1, 1], [], []>} : vector<16x64xbf16>, vector<64x64xbf16>, vector<16x64xf32> -> vector<16x64xf32>
    %34 = arith.addf %29, %33 : vector<16x64xf32>
    %35 = vector.extract_strided_slice %28 {offsets = [1, 0], sizes = [16, 64], strides = [1, 1]} : vector<18x64xbf16> to vector<16x64xbf16>
    %c1_21 = arith.constant 1 : index
    %c0_22 = arith.constant 0 : index
    %c0_23 = arith.constant 0 : index
    %36 = vector.load %arg3[%c1_21, %c0_22, %c0_23] : memref<3x64x64xbf16, #tpu.memory_space<vmem>>, vector<1x64x64xbf16>
    %37 = vector.shape_cast %36 : vector<1x64x64xbf16> to vector<64x64xbf16>
    %cst_24 = arith.constant dense<0.000000e+00> : vector<16x64xf32>
    %38 = tpu.matmul %35, %37, %cst_24 {dimension_numbers = #tpu.dot_dimension_numbers<[1], [0], [0], [1], [0, 0, 1, 1], [], []>} : vector<16x64xbf16>, vector<64x64xbf16>, vector<16x64xf32> -> vector<16x64xf32>
    %39 = arith.addf %34, %38 : vector<16x64xf32>
    %40 = vector.extract_strided_slice %28 {offsets = [2, 0], sizes = [16, 64], strides = [1, 1]} : vector<18x64xbf16> to vector<16x64xbf16>
    %c2_25 = arith.constant 2 : index
    %c0_26 = arith.constant 0 : index
    %c0_27 = arith.constant 0 : index
    %41 = vector.load %arg3[%c2_25, %c0_26, %c0_27] : memref<3x64x64xbf16, #tpu.memory_space<vmem>>, vector<1x64x64xbf16>
    %42 = vector.shape_cast %41 : vector<1x64x64xbf16> to vector<64x64xbf16>
    %cst_28 = arith.constant dense<0.000000e+00> : vector<16x64xf32>
    %43 = tpu.matmul %40, %42, %cst_28 {dimension_numbers = #tpu.dot_dimension_numbers<[1], [0], [0], [1], [0, 0, 1, 1], [], []>} : vector<16x64xbf16>, vector<64x64xbf16>, vector<16x64xf32> -> vector<16x64xf32>
    %44 = arith.addf %39, %43 : vector<16x64xf32>
    %c1_29 = arith.constant 1 : index
    %c0_30 = arith.constant 0 : index
    %45 = vector.load %arg4[%c1_29, %c0_30] : memref<2x64xf32, #tpu.memory_space<vmem>>, vector<1x64xf32>
    %46 = vector.broadcast %45 : vector<1x64xf32> to vector<16x64xf32>
    %47 = arith.addf %44, %46 : vector<16x64xf32>
    %48 = vector.extract_strided_slice %1 {offsets = [1, 0], sizes = [16, 64], strides = [1, 1]} : vector<18x64xf32> to vector<16x64xf32>
    %49 = arith.addf %47, %48 : vector<16x64xf32>
    %cst_31 = arith.constant 0.000000e+00 : f32
    %50 = vector.broadcast %cst_31 : f32 to vector<16x64xf32>
    %51 = arith.maximumf %49, %50 : vector<16x64xf32>
    %c0_32 = arith.constant 0 : index
    %c0_33 = arith.constant 0 : index
    %c0_34 = arith.constant 0 : index
    %52 = vector.load %arg5[%c0_32, %c0_33, %c0_34] : memref<1x16x64xf32, #tpu.memory_space<vmem>>, vector<1x16x64xf32>
    %53 = vector.shape_cast %52 : vector<1x16x64xf32> to vector<16x64xf32>
    %54 = vector.shape_cast %51 : vector<16x64xf32> to vector<1x16x64xf32>
    tpu.vector_store %arg5[%c0_32, %c0_33, %c0_34], %54 {strides = array<i32>} : memref<1x16x64xf32, #tpu.memory_space<vmem>>, vector<1x16x64xf32>,
    return
  }
  func.func @transform_0(%arg0: i32) -> (i32, i32, i32) {
    %c0_i32 = arith.constant 0 : i32
    %c0_i32_0 = arith.constant 0 : i32
    %c0_i32_1 = arith.constant 0 : i32
    return %arg0, %c0_i32, %c0_i32_0 : i32, i32, i32
  }
  func.func @transform_1(%arg0: i32) -> (i32, i32, i32) {
    %c0_i32 = arith.constant 0 : i32
    %c0_i32_0 = arith.constant 0 : i32
    %c0_i32_1 = arith.constant 0 : i32
    %c0_i32_2 = arith.constant 0 : i32
    return %c0_i32, %c0_i32_0, %c0_i32_1 : i32, i32, i32
  }
  func.func @transform_2(%arg0: i32) -> (i32, i32, i32) {
    %c0_i32 = arith.constant 0 : i32
    %c0_i32_0 = arith.constant 0 : i32
    %c0_i32_1 = arith.constant 0 : i32
    %c0_i32_2 = arith.constant 0 : i32
    return %c0_i32, %c0_i32_0, %c0_i32_1 : i32, i32, i32
  }
  func.func @transform_3(%arg0: i32) -> (i32, i32) {
    %c0_i32 = arith.constant 0 : i32
    %c0_i32_0 = arith.constant 0 : i32
    %c0_i32_1 = arith.constant 0 : i32
    return %c0_i32, %c0_i32_0 : i32, i32
  }
  func.func @transform_4(%arg0: i32) -> (i32, i32, i32) {
    %c0_i32 = arith.constant 0 : i32
    %c0_i32_0 = arith.constant 0 : i32
    %c0_i32_1 = arith.constant 0 : i32
    return %arg0, %c0_i32, %c0_i32_0 : i32, i32, i32
  }
}

</mosaic_0001>

<llo_original>
// kernel: tpu_custom_call.1
$region0: #{tpu_custom_call.1}
  #allocation0 [shape = 'u32[]', space=smem, size = 0x4, offset = 0x4, fixed_abs, tag = 'smem constant byte address 0x4 - core index']
  #allocation1 [shape = 'u32[72,128]{1,0:T(1,128)}', space=vmem, size = 0x9000, scoped, tag = 'internal scratch']
  %s0 = inlined_call_operand.vmem [shape: f32[2,18,64], index: 0, kind: input, shape index: {}]
  %s1 = inlined_call_operand.hbm [shape: bf16[3,64,64], index: 1, kind: input, shape index: {}]
  %s2 = inlined_call_operand.hbm [shape: bf16[3,64,64], index: 2, kind: input, shape index: {}]
  %s3 = inlined_call_operand.vmem [shape: f32[2,64], index: 3, kind: input, shape index: {}]
  %s4 = inlined_call_operand.hbm [shape: f32[2,16,64], index: 4, kind: output, shape index: {}]
  %s5 = sld [smem:[#allocation0]]
  $region57: #{tpu_custom_call.1} parent=0
    _
  %s7 = ssub.s32 1, %s5
  %s8 = scalar_select 0, %s7, %s5
  $region1: #{tpu_custom_call.1} parent=0
    #allocation2 [shape = 'u8[49152]{0}', space=vmem, size = 0xc000, scoped, tag = 'input window, operand 1, single buffered']
    #allocation3 [shape = 's32[2]{0}', space=sflag, size = 0x8, scoped, tag = 'scoped memory for tpu_custom_call.1']
    #allocation4 [shape = 's32[2]{0}', space=sflag, size = 0x8, scoped, tag = 'scoped memory for tpu_custom_call.1']
    #allocation5 [shape = 'u8[49152]{0}', space=vmem, size = 0xc000, scoped, tag = 'input window, operand 2, single buffered']
    #allocation6 [shape = 's32[1]{0}', space=sflag, size = 0x4, scoped, tag = 'scoped memory for tpu_custom_call.1']
    #allocation7 [shape = 'u8[16384]{0}', space=vmem, size = 0x4000, scoped, tag = 'output window, operand 0']
    %9 = vsyncpa [#allocation3], 0
    %10 = vsyncpa [#allocation6], 0
    %11 = vsyncpa [#allocation4], 0
    %s12 = scalar_lea.sflag [#allocation4], 1
    %13 = vsyncpa %s12, 0
    loop: start=0, step=1, limit=4
    $region2: #{tpu_custom_call.1} parent=1 // loop_pre_header
      _
    $region3: #{tpu_custom_call.1} parent=1 // loop_header
      %s15 = sphi 0, %s19
      %p16 = scmp.ge.s32.totalorder %s15, 4
      %s25 = sphi 0, %s27
      %s28 = sphi 0, %s25
      %s29 = sphi 0, %s28
      %s45 = sphi 0, %s29
      %s49 = sphi 0, %s49
      %s51 = sphi 0, %s49
      %s52 = sphi 0, %s51
      %s66 = sphi 0, %s52
      %s70 = sphi 0, %s70
      %s72 = sphi 0, %s70
      %s73 = sphi 0, %s72
      %s87 = sphi 0, %s73
      %s91 = sphi 0, %s91
      %s93 = sphi 0, %s91
      %s94 = sphi 0, %s93
      %s108 = sphi 0, %s94
      %s114 = sphi 0, %s116
      %s117 = sphi 0, %s114
      %s118 = sphi 0, %s117
      %s134 = sphi 0, %s118
    $region4: #{tpu_custom_call.1} parent=1 // loop_header_branch
      %18 = sbr.rel (%p16) target = $region8
    $region5: #{tpu_custom_call.1} parent=1 // loop_body
      %s20 = ssub.s32 %s15, 1
      %s21 = ssub.s32 %s15, 2
      %s22 = sadd.s32 %s15, 1
      %s23 = ssub.s32 %s15, %s22
      %p24 = scmp.eq.s32.totalorder %s23, 0
      %s26 = sadd.s32 %s25, 1
      %s27 = scalar_select %p24, %s25, %s26
      %p30 = pneg %p24
      %p31 = scmp.eq.s32.totalorder %s15, 1
      %p32 = por %p30, %p31
      %p33 = scmp.ne.s32.totalorder %s25, %s28
      %p34 = scmp.eq.s32.totalorder %s15, 0
      %p35 = por %p33, %p34
      %p36 = scmp.ne.s32.totalorder %s25, %s28
      %p37 = scmp.eq.s32.totalorder %s20, 1
      %p38 = por %p36, %p37
      %p39 = scmp.ne.s32.totalorder %s28, %s29
      %p40 = scmp.eq.s32.totalorder %s20, 0
      %p41 = por %p39, %p40
      %p42 = scmp.ne.s32.totalorder %s28, %s29
      %p43 = scmp.eq.s32.totalorder %s21, 1
      %p44 = por %p42, %p43
      %p46 = scmp.ne.s32.totalorder %s29, %s45
      %p47 = scmp.eq.s32.totalorder %s21, 0
      %p48 = por %p46, %p47
      %s50 = sadd.s32 %s49, 1
      %p53 = scmp.eq.s32.totalorder %s15, 1
      %p54 = scmp.ne.s32.totalorder %s49, %s51
      %p55 = scmp.eq.s32.totalorder %s15, 0
      %p56 = por %p54, %p55
      %p57 = scmp.ne.s32.totalorder %s49, %s51
      %p58 = scmp.eq.s32.totalorder %s20, 1
      %p59 = por %p57, %p58
      %p60 = scmp.ne.s32.totalorder %s51, %s52
      %p61 = scmp.eq.s32.totalorder %s20, 0
      %p62 = por %p60, %p61
      %p63 = scmp.ne.s32.totalorder %s51, %s52
      %p64 = scmp.eq.s32.totalorder %s21, 1
      %p65 = por %p63, %p64
      %p67 = scmp.ne.s32.totalorder %s52, %s66
      %p68 = scmp.eq.s32.totalorder %s21, 0
      %p69 = por %p67, %p68
      %s71 = sadd.s32 %s70, 1
      %p74 = scmp.eq.s32.totalorder %s15, 1
      %p75 = scmp.ne.s32.totalorder %s70, %s72
      %p76 = scmp.eq.s32.totalorder %s15, 0
      %p77 = por %p75, %p76
      %p78 = scmp.ne.s32.totalorder %s70, %s72
      %p79 = scmp.eq.s32.totalorder %s20, 1
      %p80 = por %p78, %p79
      %p81 = scmp.ne.s32.totalorder %s72, %s73
      %p82 = scmp.eq.s32.totalorder %s20, 0
      %p83 = por %p81, %p82
      %p84 = scmp.ne.s32.totalorder %s72, %s73
      %p85 = scmp.eq.s32.totalorder %s21, 1
      %p86 = por %p84, %p85
      %p88 = scmp.ne.s32.totalorder %s73, %s87
      %p89 = scmp.eq.s32.totalorder %s21, 0
      %p90 = por %p88, %p89
      %s92 = sadd.s32 %s91, 1
      %p95 = scmp.eq.s32.totalorder %s15, 1
      %p96 = scmp.ne.s32.totalorder %s91, %s93
      %p97 = scmp.eq.s32.totalorder %s15, 0
      %p98 = por %p96, %p97
      %p99 = scmp.ne.s32.totalorder %s91, %s93
      %p100 = scmp.eq.s32.totalorder %s20, 1
      %p101 = por %p99, %p100
      %p102 = scmp.ne.s32.totalorder %s93, %s94
      %p103 = scmp.eq.s32.totalorder %s20, 0
      %p104 = por %p102, %p103
      %p105 = scmp.ne.s32.totalorder %s93, %s94
      %p106 = scmp.eq.s32.totalorder %s21, 1
      %p107 = por %p105, %p106
      %p109 = scmp.ne.s32.totalorder %s94, %s108
      %p110 = scmp.eq.s32.totalorder %s21, 0
      %p111 = por %p109, %p110
      %s112 = ssub.s32 %s15, %s22
      %p113 = scmp.eq.s32.totalorder %s112, 0
      %s115 = sadd.s32 %s114, 1
      %s116 = scalar_select %p113, %s114, %s115
      %p119 = pneg %p113
      %p120 = scmp.eq.s32.totalorder %s15, 1
      %p121 = por %p119, %p120
      %p122 = scmp.ne.s32.totalorder %s114, %s117
      %p123 = scmp.eq.s32.totalorder %s15, 0
      %p124 = por %p122, %p123
      %p125 = scmp.ne.s32.totalorder %s114, %s117
      %p126 = scmp.eq.s32.totalorder %s20, 1
      %p127 = por %p125, %p126
      %p128 = scmp.ne.s32.totalorder %s117, %s118
      %p129 = scmp.eq.s32.totalorder %s20, 0
      %p130 = por %p128, %p129
      %p131 = scmp.ne.s32.totalorder %s117, %s118
      %p132 = scmp.eq.s32.totalorder %s21, 1
      %p133 = por %p131, %p132
      %p135 = scmp.ne.s32.totalorder %s118, %s134
      %p136 = scmp.eq.s32.totalorder %s21, 0
      %p137 = por %p135, %p136
      %p138 = scmp.le.s32.totalorder 1, %s15
      %p139 = scmp.lt.s32.totalorder %s15, 3
      %p140 = pnand %p138, %p139
      %p141 = pneg %p140
      // Predicated region
      $region9: #{tpu_custom_call.1} parent=5 // pred_check
        _
      $region10: #{tpu_custom_call.1} parent=5 // pred_check_branch
        %143 = sbr.rel (%p140) target = $region12
      $region11: #{tpu_custom_call.1} parent=5 // pred_region
        %s144 = ssub.s32 %s15, 1
        // Predicated region
        $region13: #{tpu_custom_call.1} parent=11 // pred_check
          %p145 = pneg %p62
        $region14: #{tpu_custom_call.1} parent=11 // pred_check_branch
          %147 = sbr.rel (%p145) target = $region16
        $region15: #{tpu_custom_call.1} parent=11 // pred_region
          %149 = vsyncadd [#allocation3], 0
          %s150 = sshll.u32 %s1, 4
          %s151 = int_to_ptr.hbm [resolvable:$true] %s150
          %s152 = sshll.u32 [#allocation2], 4
          %s153 = int_to_ptr.vmem [resolvable:$true] %s152
          %158 = dma.hbm_to_vmem [thread:$0]  %s151, 1536, %s153, [#allocation3], 64, 64, 4
        $region16: #{tpu_custom_call.1} parent=11 // pred_fallthru
          _
        // Predicated region
        $region17: #{tpu_custom_call.1} parent=11 // pred_check
          %p159 = pneg %p83
        $region18: #{tpu_custom_call.1} parent=11 // pred_check_branch
          %161 = sbr.rel (%p159) target = $region20
        $region19: #{tpu_custom_call.1} parent=11 // pred_region
          %163 = vsyncadd [#allocation6], 0
          %s164 = sshll.u32 %s2, 4
          %s165 = int_to_ptr.hbm [resolvable:$true] %s164
          %s166 = sshll.u32 [#allocation5], 4
          %s167 = int_to_ptr.vmem [resolvable:$true] %s166
          %172 = dma.hbm_to_vmem [thread:$0]  %s165, 1536, %s167, [#allocation6], 64, 64, 4
        $region20: #{tpu_custom_call.1} parent=11 // pred_fallthru
          _
        // Predicated region
        $region21: #{tpu_custom_call.1} parent=11 // pred_check
          %p173 = pneg %p104
        $region22: #{tpu_custom_call.1} parent=11 // pred_check_branch
          %175 = sbr.rel (%p173) target = $region24
        $region23: #{tpu_custom_call.1} parent=11 // pred_region
          _
        $region24: #{tpu_custom_call.1} parent=11 // pred_fallthru
          _
      $region12: #{tpu_custom_call.1} parent=5 // pred_fallthru
        _
      %p176 = scmp.lt.s32.totalorder %s15, 2
      // Predicated region
      $region25: #{tpu_custom_call.1} parent=5 // pred_check
        %p177 = pneg %p176
      $region26: #{tpu_custom_call.1} parent=5 // pred_check_branch
        %179 = sbr.rel (%p177) target = $region28
      $region27: #{tpu_custom_call.1} parent=5 // pred_region
        // Predicated region
        $region29: #{tpu_custom_call.1} parent=27 // pred_check
          %p180 = pneg %p35
        $region30: #{tpu_custom_call.1} parent=27 // pred_check_branch
          %182 = sbr.rel (%p180) target = $region32
        $region31: #{tpu_custom_call.1} parent=27 // pred_region
          %p183 = scmp.lt.s32.totalorder %s15, 1
          %s184 = scalar_select %p183, %s15, 1
          %s185 = smul.addr %s184, 3
          %s186 = smul.addr %s185, 8
          %s187 = scalar_lea.vmem %s0, %s186
        $region32: #{tpu_custom_call.1} parent=27 // pred_fallthru
          _
      $region28: #{tpu_custom_call.1} parent=5 // pred_fallthru
        _
      %p188 = scmp.le.s32.totalorder 1, %s15
      %p189 = scmp.lt.s32.totalorder %s15, 3
      %p190 = pnand %p188, %p189
      %p191 = pneg %p190
      // Predicated region
      $region33: #{tpu_custom_call.1} parent=5 // pred_check
        _
      $region34: #{tpu_custom_call.1} parent=5 // pred_check_branch
        %193 = sbr.rel (%p190) target = $region36
      $region35: #{tpu_custom_call.1} parent=5 // pred_region
        %s194 = ssub.s32 %s15, 1
        // Predicated region
        $region37: #{tpu_custom_call.1} parent=35 // pred_check
          %p195 = pneg %p62
        $region38: #{tpu_custom_call.1} parent=35 // pred_check_branch
          %197 = sbr.rel (%p195) target = $region40
        $region39: #{tpu_custom_call.1} parent=35 // pred_region
          %199 = dma.done [#allocation3], 1536
        $region40: #{tpu_custom_call.1} parent=35 // pred_fallthru
          _
        // Predicated region
        $region41: #{tpu_custom_call.1} parent=35 // pred_check
          %p200 = pneg %p83
        $region42: #{tpu_custom_call.1} parent=35 // pred_check_branch
          %202 = sbr.rel (%p200) target = $region44
        $region43: #{tpu_custom_call.1} parent=35 // pred_region
          %204 = dma.done [#allocation6], 1536
        $region44: #{tpu_custom_call.1} parent=35 // pred_fallthru
          _
        %p205 = scmp.lt.s32.totalorder %s20, 1
        %s206 = scalar_select %p205, %s20, 1
        %s207 = smul.addr %s206, 3
        %s208 = smul.addr %s207, 8
        %s209 = scalar_lea.vmem %s0, %s208
        %p210 = pneg %p41
        %p211 = pneg %p38
        %p212 = pneg %p62
        %p213 = pneg %p59
        %p214 = pneg %p83
        %p215 = pneg %p80
        %p216 = pneg %p104
        %p217 = pneg %p101
        %p218 = pneg %p130
        %p219 = pneg %p127
        %s220 = sand.u32 %s117, 1
        %s221 = scalar_lea.sflag [#allocation4], %s220
        %s222 = sand.u32 %s117, 1
        %s223 = smul.addr %s222, 16
        %s224 = scalar_lea.vmem [#allocation7], %s223
        %p225 = scmp.lt.s32.totalorder %s20, 1
        %s226 = scalar_select %p225, %s20, 1
        %s227 = smul.addr %s226, 3
        %s228 = smul.addr %s227, 8
        %s229 = scalar_lea.vmem %s0, %s228
        %v231 = vld [vmem:[%s229] sm:$0xff]
        %v232 = vld [vmem:[%s229 + $0x8] sm:$0xff]
        %v233 = vld [vmem:[%s229 + $0x10] sm:$0x3]
        %v234 = vpack.c.bf16 %v232, %v231
        %v235 = vld [vmem:[#allocation2] sm:$0xf]
        %v236 = vld [vmem:[#allocation2 + $0x4] sm:$0xf]
        %v237 = vld [vmem:[#allocation2 + $0x8] sm:$0xf]
        %v238 = vld [vmem:[#allocation2 + $0xc] sm:$0xf]
        %v239 = vld [vmem:[#allocation2 + $0x10] sm:$0xf]
        %v240 = vld [vmem:[#allocation2 + $0x14] sm:$0xf]
        %v241 = vld [vmem:[#allocation2 + $0x18] sm:$0xf]
        %v242 = vld [vmem:[#allocation2 + $0x1c] sm:$0xf]
        %v243 = vpack.c.bf16 %v233, %v233
        %s244 = scalar_lea.vmem [#allocation2], 32
        %v245 = vld [vmem:[%s244] sm:$0xf]
        %v246 = vld [vmem:[%s244 + $0x4] sm:$0xf]
        %v247 = vld [vmem:[%s244 + $0x8] sm:$0xf]
        %v248 = vld [vmem:[%s244 + $0xc] sm:$0xf]
        %v249 = vld [vmem:[%s244 + $0x10] sm:$0xf]
        %v250 = vld [vmem:[%s244 + $0x14] sm:$0xf]
        %v251 = vld [vmem:[%s244 + $0x18] sm:$0xf]
        %v252 = vld [vmem:[%s244 + $0x1c] sm:$0xf]
        %vm253 = vsmask.f32 7424
        %v255 = vshrl.u32 %v234, 16
        %v257 = vshll.u32 %v234, 16
        %v259 = vrot.slane %v257, 1
        %v260 = vor.u32 %v255, %v259
        %v262 = vshll.u32 %v243, 16
        %v264 = vrot.slane %v262, 1
        %v265 = vsel %vm253, %v260, %v264
        %v274 = vunpack.c.l.b16 %v245
        %v275 = vunpack.c.l.b16 %v246
        %v276 = vunpack.c.l.b16 %v247
        %v277 = vunpack.c.l.b16 %v248
        %v278 = vunpack.c.l.b16 %v249
        %v279 = vunpack.c.l.b16 %v250
        %v280 = vunpack.c.l.b16 %v251
        %v281 = vunpack.c.l.b16 %v252
        %v282 = vpack.c.b16 %v275, %v274
        %v283 = vpack.c.b16 %v277, %v276
        %v284 = vpack.c.b16 %v279, %v278
        %v285 = vpack.c.b16 %v281, %v280
        %vm290 = vcmask 523264
        %v292 = vsel %vm290, %v265, 0
        %294 = vmatpush.bf16.msra.mxu0 0
        %295 = vmatpush.bf16.msra.mxu0 0
        %296 = vmatpush.bf16.msra.mxu0 0
        %297 = vmatpush.bf16.msra.mxu0 0
        %298 = vmatpush.bf16.msra.mxu0 %v285
        %299 = vmatpush.bf16.msra.mxu0 %v284
        %300 = vmatpush.bf16.msra.mxu0 %v283
        %301 = vmatpush.bf16.msra.mxu0 %v282
        %302 = vmatmul.bf16.gmra.mxu0 %v292
        %v303 = vpop.f32.mrf.mxu0
        %v304 = vadd.f32 0.0, %v303
        %v305 = vpop.f32.mrf.mxu0
        %v306 = vadd.f32 0.0, %v305
        %307 = vdwg.mxu0
        %v316 = vunpack.c.l.b16 %v235
        %v317 = vunpack.c.l.b16 %v236
        %v318 = vunpack.c.l.b16 %v237
        %v319 = vunpack.c.l.b16 %v238
        %v320 = vunpack.c.l.b16 %v239
        %v321 = vunpack.c.l.b16 %v240
        %v322 = vunpack.c.l.b16 %v241
        %v323 = vunpack.c.l.b16 %v242
        %v324 = vpack.c.b16 %v317, %v316
        %v325 = vpack.c.b16 %v319, %v318
        %v326 = vpack.c.b16 %v321, %v320
        %v327 = vpack.c.b16 %v323, %v322
        %v332 = vsel %vm290, %v234, 0
        %334 = vmatpush.bf16.msra.mxu0 0
        %335 = vmatpush.bf16.msra.mxu0 0
        %336 = vmatpush.bf16.msra.mxu0 0
        %337 = vmatpush.bf16.msra.mxu0 0
        %338 = vmatpush.bf16.msra.mxu0 %v327
        %339 = vmatpush.bf16.msra.mxu0 %v326
        %340 = vmatpush.bf16.msra.mxu0 %v325
        %341 = vmatpush.bf16.msra.mxu0 %v324
        %342 = vmatmul.bf16.gmra.mxu0 %v332
        %v343 = vpop.f32.mrf.mxu0
        %v344 = vadd.f32 %v304, %v343
        %v345 = vpop.f32.mrf.mxu0
        %v346 = vadd.f32 %v306, %v345
        %347 = vdwg.mxu0
        %s348 = scalar_lea.vmem [#allocation2], 64
        %v349 = vld [vmem:[%s348] sm:$0xf]
        %v350 = vld [vmem:[%s348 + $0x4] sm:$0xf]
        %v351 = vld [vmem:[%s348 + $0x8] sm:$0xf]
        %v352 = vld [vmem:[%s348 + $0xc] sm:$0xf]
        %v353 = vld [vmem:[%s348 + $0x10] sm:$0xf]
        %v354 = vld [vmem:[%s348 + $0x14] sm:$0xf]
        %v355 = vld [vmem:[%s348 + $0x18] sm:$0xf]
        %v356 = vld [vmem:[%s348 + $0x1c] sm:$0xf]
        %vm359 = vcmask 1046528
        %v360 = vrot.slane %v234, 1
        %v361 = vrot.slane %v243, 1
        %v362 = vsel %vm359, %v360, %v361
        %v371 = vunpack.c.l.b16 %v349
        %v372 = vunpack.c.l.b16 %v350
        %v373 = vunpack.c.l.b16 %v351
        %v374 = vunpack.c.l.b16 %v352
        %v375 = vunpack.c.l.b16 %v353
        %v376 = vunpack.c.l.b16 %v354
        %v377 = vunpack.c.l.b16 %v355
        %v378 = vunpack.c.l.b16 %v356
        %v379 = vpack.c.b16 %v372, %v371
        %v380 = vpack.c.b16 %v374, %v373
        %v381 = vpack.c.b16 %v376, %v375
        %v382 = vpack.c.b16 %v378, %v377
        %v388 = vsel %vm290, %v362, 0
        %390 = vmatpush.bf16.msra.mxu0 0
        %391 = vmatpush.bf16.msra.mxu0 0
        %392 = vmatpush.bf16.msra.mxu0 0
        %393 = vmatpush.bf16.msra.mxu0 0
        %394 = vmatpush.bf16.msra.mxu0 %v382
        %395 = vmatpush.bf16.msra.mxu0 %v381
        %396 = vmatpush.bf16.msra.mxu0 %v380
        %397 = vmatpush.bf16.msra.mxu0 %v379
        %398 = vmatmul.bf16.gmra.mxu0 %v388
        %v399 = vpop.f32.mrf.mxu0
        %v400 = vadd.f32 0.0, %v399
        %v401 = vpop.f32.mrf.mxu0
        %v402 = vadd.f32 0.0, %v401
        %403 = vdwg.mxu0
        %v404 = vadd.f32 %v344, %v400
        %v405 = vadd.f32 %v346, %v402
        %v406 = vld [vmem:[%s3] sm:$0x1]
        %v407 = vperm.slane %v406, 0
        %v408 = vadd.f32 %v404, %v407
        %v409 = vadd.f32 %v405, %v407
        %v410 = vmax.f32 %v408, 0.0
        %v411 = vmax.f32 %v409, 0.0
        %v412 = vpack.c.bf16 %v410, %v410
        %v413 = vpack.c.bf16 %v411, %v411
        %v416 = vunpack.c.l.b16 %v412
        %v417 = vunpack.c.l.b16 %v413
        %v418 = vpack.c.b16 %v417, %v416
        %v420 = vshrl.u32 %v418, 16
        %v422 = vrot.slane %v420, 7
        %v423 = vshll.u32 %v418, 16
        %v425 = vor.u32 %v422, %v423
        %vm428 = vcmask 1040384
        %vm429 = vsmask.f32 256
        %vm430 = vmand %vm428, %vm429
        %v431 = vsel %vm430, 0, %v425
        %v432 = vsel %vm430, %v422, 0
        %v433 = vld [vmem:[#allocation5] sm:$0xf]
        %v434 = vld [vmem:[#allocation5 + $0x4] sm:$0xf]
        %v435 = vld [vmem:[#allocation5 + $0x8] sm:$0xf]
        %v436 = vld [vmem:[#allocation5 + $0xc] sm:$0xf]
        %v437 = vld [vmem:[#allocation5 + $0x10] sm:$0xf]
        %v438 = vld [vmem:[#allocation5 + $0x14] sm:$0xf]
        %v439 = vld [vmem:[#allocation5 + $0x18] sm:$0xf]
        %v440 = vld [vmem:[#allocation5 + $0x1c] sm:$0xf]
        %s441 = scalar_lea.vmem [#allocation5], 32
        %v442 = vld [vmem:[%s441] sm:$0xf]
        %v443 = vld [vmem:[%s441 + $0x4] sm:$0xf]
        %v444 = vld [vmem:[%s441 + $0x8] sm:$0xf]
        %v445 = vld [vmem:[%s441 + $0xc] sm:$0xf]
        %v446 = vld [vmem:[%s441 + $0x10] sm:$0xf]
        %v447 = vld [vmem:[%s441 + $0x14] sm:$0xf]
        %v448 = vld [vmem:[%s441 + $0x18] sm:$0xf]
        %v449 = vld [vmem:[%s441 + $0x1c] sm:$0xf]
        %v451 = vshrl.u32 %v431, 16
        %v453 = vshll.u32 %v431, 16
        %v455 = vrot.slane %v453, 1
        %v456 = vor.u32 %v451, %v455
        %v458 = vshll.u32 %v432, 16
        %v460 = vrot.slane %v458, 1
        %v461 = vsel %vm253, %v456, %v460
        %v470 = vunpack.c.l.b16 %v442
        %v471 = vunpack.c.l.b16 %v443
        %v472 = vunpack.c.l.b16 %v444
        %v473 = vunpack.c.l.b16 %v445
        %v474 = vunpack.c.l.b16 %v446
        %v475 = vunpack.c.l.b16 %v447
        %v476 = vunpack.c.l.b16 %v448
        %v477 = vunpack.c.l.b16 %v449
        %v478 = vpack.c.b16 %v471, %v470
        %v479 = vpack.c.b16 %v473, %v472
        %v480 = vpack.c.b16 %v475, %v474
        %v481 = vpack.c.b16 %v477, %v476
        %v487 = vsel %vm290, %v461, 0
        %489 = vmatpush.bf16.msra.mxu0 0
        %490 = vmatpush.bf16.msra.mxu0 0
        %491 = vmatpush.bf16.msra.mxu0 0
        %492 = vmatpush.bf16.msra.mxu0 0
        %493 = vmatpush.bf16.msra.mxu0 %v481
        %494 = vmatpush.bf16.msra.mxu0 %v480
        %495 = vmatpush.bf16.msra.mxu0 %v479
        %496 = vmatpush.bf16.msra.mxu0 %v478
        %497 = vmatmul.bf16.gmra.mxu0 %v487
        %v498 = vpop.f32.mrf.mxu0
        %v499 = vadd.f32 0.0, %v498
        %v500 = vpop.f32.mrf.mxu0
        %v501 = vadd.f32 0.0, %v500
        %502 = vdwg.mxu0
        %v511 = vunpack.c.l.b16 %v433
        %v512 = vunpack.c.l.b16 %v434
        %v513 = vunpack.c.l.b16 %v435
        %v514 = vunpack.c.l.b16 %v436
        %v515 = vunpack.c.l.b16 %v437
        %v516 = vunpack.c.l.b16 %v438
        %v517 = vunpack.c.l.b16 %v439
        %v518 = vunpack.c.l.b16 %v440
        %v519 = vpack.c.b16 %v512, %v511
        %v520 = vpack.c.b16 %v514, %v513
        %v521 = vpack.c.b16 %v516, %v515
        %v522 = vpack.c.b16 %v518, %v517
        %v527 = vsel %vm290, %v431, 0
        %529 = vmatpush.bf16.msra.mxu0 0
        %530 = vmatpush.bf16.msra.mxu0 0
        %531 = vmatpush.bf16.msra.mxu0 0
        %532 = vmatpush.bf16.msra.mxu0 0
        %533 = vmatpush.bf16.msra.mxu0 %v522
        %534 = vmatpush.bf16.msra.mxu0 %v521
        %535 = vmatpush.bf16.msra.mxu0 %v520
        %536 = vmatpush.bf16.msra.mxu0 %v519
        %537 = vmatmul.bf16.gmra.mxu0 %v527
        %v538 = vpop.f32.mrf.mxu0
        %v539 = vadd.f32 %v499, %v538
        %v540 = vpop.f32.mrf.mxu0
        %v541 = vadd.f32 %v501, %v540
        %542 = vdwg.mxu0
        %s543 = scalar_lea.vmem [#allocation5], 64
        %v544 = vld [vmem:[%s543] sm:$0xf]
        %v545 = vld [vmem:[%s543 + $0x4] sm:$0xf]
        %v546 = vld [vmem:[%s543 + $0x8] sm:$0xf]
        %v547 = vld [vmem:[%s543 + $0xc] sm:$0xf]
        %v548 = vld [vmem:[%s543 + $0x10] sm:$0xf]
        %v549 = vld [vmem:[%s543 + $0x14] sm:$0xf]
        %v550 = vld [vmem:[%s543 + $0x18] sm:$0xf]
        %v551 = vld [vmem:[%s543 + $0x1c] sm:$0xf]
        %v554 = vrot.slane %v431, 1
        %v555 = vrot.slane %v432, 1
        %v556 = vsel %vm359, %v554, %v555
        %v565 = vunpack.c.l.b16 %v544
        %v566 = vunpack.c.l.b16 %v545
        %v567 = vunpack.c.l.b16 %v546
        %v568 = vunpack.c.l.b16 %v547
        %v569 = vunpack.c.l.b16 %v548
        %v570 = vunpack.c.l.b16 %v549
        %v571 = vunpack.c.l.b16 %v550
        %v572 = vunpack.c.l.b16 %v551
        %v573 = vpack.c.b16 %v566, %v565
        %v574 = vpack.c.b16 %v568, %v567
        %v575 = vpack.c.b16 %v570, %v569
        %v576 = vpack.c.b16 %v572, %v571
        %v582 = vsel %vm290, %v556, 0
        %584 = vmatpush.bf16.msra.mxu0 0
        %585 = vmatpush.bf16.msra.mxu0 0
        %586 = vmatpush.bf16.msra.mxu0 0
        %587 = vmatpush.bf16.msra.mxu0 0
        %588 = vmatpush.bf16.msra.mxu0 %v576
        %589 = vmatpush.bf16.msra.mxu0 %v575
        %590 = vmatpush.bf16.msra.mxu0 %v574
        %591 = vmatpush.bf16.msra.mxu0 %v573
        %592 = vmatmul.bf16.gmra.mxu0 %v582
        %v593 = vpop.f32.mrf.mxu0
        %v594 = vadd.f32 0.0, %v593
        %v595 = vpop.f32.mrf.mxu0
        %v596 = vadd.f32 0.0, %v595
        %597 = vdwg.mxu0
        %v598 = vadd.f32 %v539, %v594
        %v599 = vadd.f32 %v541, %v596
        %v600 = vld [vmem:[%s3 + $0x1] sm:$0x1]
        %v601 = vperm.slane %v600, 0
        %v602 = vadd.f32 %v598, %v601
        %v603 = vadd.f32 %v599, %v601
        %vm607 = vcmask 1046528
        %v608 = vrot.slane %v231, 1
        %v609 = vrot.slane %v232, 1
        %v610 = vsel %vm607, %v608, %v609
        %v611 = vrot.slane %v233, 1
        %v612 = vsel %vm607, %v609, %v611
        %v615 = vadd.f32 %v602, %v610
        %v616 = vadd.f32 %v603, %v612
        %v617 = vmax.f32 %v615, 0.0
        %v618 = vmax.f32 %v616, 0.0
        %619 = vst.msk [vmem:[%s224] sm:$0xff] %vm290, %v617
        %620 = vst.msk [vmem:[%s224 + $0x8] sm:$0xff] %vm290, %v618
        %s621 = sand.u32 %s117, 1
        %s622 = scalar_lea.sflag [#allocation4], %s621
        %s623 = sand.u32 %s117, 1
        %s624 = smul.addr %s623, 16
        %s625 = scalar_lea.vmem [#allocation7], %s624
        // Predicated region
        $region45: #{tpu_custom_call.1} parent=35 // pred_check
          %p626 = pneg %p127
        $region46: #{tpu_custom_call.1} parent=35 // pred_check_branch
          %628 = sbr.rel (%p626) target = $region48
        $region47: #{tpu_custom_call.1} parent=35 // pred_region
          %630 = vsyncadd %s622, 0
          %s631 = smul.addr %s20, 2
          %s632 = smul.addr %s631, 8
          %s633 = scalar_lea.hbm %s4, %s632
          %s634 = sshll.u32 %s625, 4
          %s635 = int_to_ptr.vmem [resolvable:$true] %s634
          %s636 = sshll.u32 %s633, 4
          %s637 = int_to_ptr.hbm [resolvable:$true] %s636
          %642 = dma.vmem_to_hbm [thread:$0]  %s635, 256, %s637, %s622, 128, 128, 8
        $region48: #{tpu_custom_call.1} parent=35 // pred_fallthru
          _
      $region36: #{tpu_custom_call.1} parent=5 // pred_fallthru
        _
      %p643 = scmp.le.s32.totalorder 2, %s15
      // Predicated region
      $region49: #{tpu_custom_call.1} parent=5 // pred_check
        %p644 = pneg %p643
      $region50: #{tpu_custom_call.1} parent=5 // pred_check_branch
        %646 = sbr.rel (%p644) target = $region52
      $region51: #{tpu_custom_call.1} parent=5 // pred_region
        %s647 = ssub.s32 %s15, 2
        // Predicated region
        $region53: #{tpu_custom_call.1} parent=51 // pred_check
          %p648 = pneg %p133
        $region54: #{tpu_custom_call.1} parent=51 // pred_check_branch
          %650 = sbr.rel (%p648) target = $region56
        $region55: #{tpu_custom_call.1} parent=51 // pred_region
          %s651 = sand.u32 %s118, 1
          %s652 = scalar_lea.sflag [#allocation4], %s651
          %s653 = sand.u32 %s118, 1
          %s654 = smul.addr %s653, 16
          %s655 = scalar_lea.vmem [#allocation7], %s654
          %657 = dma.done %s652, 256
        $region56: #{tpu_custom_call.1} parent=51 // pred_fallthru
          _
      $region52: #{tpu_custom_call.1} parent=5 // pred_fallthru
        _
    $region6: #{tpu_custom_call.1} parent=1 // loop_footer
      %s19 = sadd.s32 1, %s15
    $region7: #{tpu_custom_call.1} parent=1 // loop_footer_branch
      %14 = sbr.rel target = $region3
    $region8: #{tpu_custom_call.1} parent=1 // loop_exit
      _
    %658 = vsyncpa [#allocation3], 1
    %s659 = scalar_lea.sflag [#allocation3], 1
    %660 = vsyncpa %s659, 1
    %661 = vsyncpa [#allocation6], 1
    %662 = vsyncpa [#allocation4], 1
    %s663 = scalar_lea.sflag [#allocation4], 1
    %664 = vsyncpa %s663, 1

</llo_original>
